<compile_context>
chip_gen: v5e
topology: v5e:2x2
jax: 0.10.0
libtpu: 0.0.40
codegen_flags: <defaults>
</compile_context>

<pallas_src>
import jax
import jax.numpy as jnp
from jax.experimental import pallas as pl
from jax.experimental.pallas import tpu as pltpu

HIDDEN = 512


def discriminator_kernel(z_ref, w1_ref, b1_ref, w2_ref, b2_ref, w3_ref, b3_ref,
                         out_ref):
    # ---- Layer 1: (TB, z_dim) @ (z_dim, 512) + b1 -> ReLU  (bf16 MXU, f32 acc)
    z = z_ref[...].astype(jnp.bfloat16)
    h1 = jnp.dot(z, w1_ref[...], preferred_element_type=jnp.float32)
    h1 = jnp.maximum(h1 + b1_ref[...], 0.0)

    # ---- Layer 2: (TB, 512) @ (512, 512) + b2 -> ReLU  (bf16 MXU, f32 acc)
    h2 = jnp.dot(h1.astype(jnp.bfloat16), w2_ref[...],
                 preferred_element_type=jnp.float32)
    h2 = jnp.maximum(h2 + b2_ref[...], 0.0)

    # ---- Layer 3: N=1 -> VPU multiply + lane reduction (skip the MXU entirely)
    w3_row = w3_ref[...]                                   # (1, 512) f32
    h3 = jnp.sum(h2 * w3_row, axis=-1, keepdims=True)      # (TB, 1) f32
    h3 = h3 + b3_ref[0, 0]                                 # scalar bias from SMEM

    out_ref[...] = jax.nn.sigmoid(h3).astype(out_ref.dtype)


def discriminator_forward(z, params):
    """z: (B, z_dim) float32; params: dict of weights/biases (see init_params)."""
    w1, b1, w2, b2, w3, b3 = (params["w1"], params["b1"], params["w2"],
                              params["b2"], params["w3"], params["b3"])
    B, z_dim = z.shape

    # Batch tile: full batch if small, else 512-row tiles (multiple of 8).
    TB = B if B <= 512 else 512
    grid = (pl.cdiv(B, TB),)

    # Weights/biases: constant block index -> DMA'd once, VMEM-resident.
    resident = lambda a: pl.BlockSpec(a.shape, lambda i: tuple(0 for _ in a.shape))

    flops = 2 * B * (z_dim * HIDDEN + HIDDEN * HIDDEN + HIDDEN)
    bytes_accessed = (
        z.size * z.dtype.itemsize
        + sum(int(a.size) * a.dtype.itemsize for a in (w1, b1, w2, b2, w3, b3))
        + B * 4)  # output

    return pl.pallas_call(
        discriminator_kernel,
        out_shape=jax.ShapeDtypeStruct((B, 1), jnp.float32),
        grid=grid,
        in_specs=[
            pl.BlockSpec((TB, z_dim), lambda i: (i, 0)),     # z tile (pipelined)
            resident(w1),                                    # (z_dim, 512) bf16
            resident(b1),                                    # (1, 512) f32
            resident(w2),                                    # (512, 512) bf16
            resident(b2),                                    # (1, 512) f32
            resident(w3),                                    # (1, 512) f32
            pl.BlockSpec(memory_space=pltpu.MemorySpace.SMEM),  # b3 scalar
        ],
        # TODO(synk): for B in the many-thousands, reshape the output lane-dense
        # ((B//128, 128)) outside the kernel to avoid masked 1-lane stores.
        out_specs=pl.BlockSpec((TB, 1), lambda i: (i, 0)),
        compiler_params=pltpu.CompilerParams(
            dimension_semantics=("parallel",),
            vmem_limit_bytes=8 << 20,  # ~0.6 MiB weights + tiles; fits v7x easily
        ),
        cost_estimate=pl.CostEstimate(
            flops=flops, transcendentals=B, bytes_accessed=bytes_accessed),
    )(z, w1, b1, w2, b2, w3, b3)


def init_params(key, z_dim=10, hidden=HIDDEN):
    """Kaiming-normal (fan_in, relu gain) init matching the PyTorch module; biases = 0."""
    k1, k2, k3 = jax.random.split(key, 3)

    def kaiming(k, fan_in, fan_out):
        std = (2.0 / fan_in) ** 0.5
        return std * jax.random.normal(k, (fan_in, fan_out), dtype=jnp.float32)

    return {
        # matmul weights stored (in, out) and cast to bf16 (halves weight DMA)
        "w1": kaiming(k1, z_dim, hidden).astype(jnp.bfloat16),
        "b1": jnp.zeros((1, hidden), jnp.float32),
        "w2": kaiming(k2, hidden, hidden).astype(jnp.bfloat16),
        "b2": jnp.zeros((1, hidden), jnp.float32),
        # output layer kept f32: (1, 512) row for VPU multiply + lane reduce
        "w3": kaiming(k3, hidden, 1).T.astype(jnp.float32),   # -> (1, 512)
        "b3": jnp.zeros((1, 1), jnp.float32),
    }


if __name__ == "__main__":
    z_dim = 10
    batch = 8

    key = jax.random.PRNGKey(0)
    pkey, zkey = jax.random.split(key)
    params = init_params(pkey, z_dim=z_dim)
    z = jax.random.normal(zkey, (batch, z_dim), dtype=jnp.float32)

    out = discriminator_forward(z, params)
    out = jax.block_until_ready(out)

    # Reference in plain JAX with the same bf16 weights / f32 accumulation.
    h1 = jnp.maximum(
        jnp.dot(z.astype(jnp.bfloat16), params["w1"],
                preferred_element_type=jnp.float32) + params["b1"], 0.0)
    h2 = jnp.maximum(
        jnp.dot(h1.astype(jnp.bfloat16), params["w2"],
                preferred_element_type=jnp.float32) + params["b2"], 0.0)
    ref = jax.nn.sigmoid(
        jnp.sum(h2 * params["w3"], axis=-1, keepdims=True) + params["b3"][0, 0])

    assert out.shape == (batch, 1)
    assert jnp.allclose(out, ref, atol=5e-3, rtol=5e-3), (
        f"max abs err {jnp.max(jnp.abs(out - ref))}")

    print("KERNEL_OK")
</pallas_src>

<mosaic_0001>
module attributes {stable_mosaic.version = 11 : i64} {
  func.func @discriminator_kernel(%arg0: i32, %arg1: memref<8x10xf32, #tpu.memory_space<vmem>>, %arg2: memref<10x512xbf16, #tpu.memory_space<vmem>>, %arg3: memref<1x512xf32, #tpu.memory_space<vmem>>, %arg4: memref<512x512xbf16, #tpu.memory_space<vmem>>, %arg5: memref<1x512xf32, #tpu.memory_space<vmem>>, %arg6: memref<1x512xf32, #tpu.memory_space<vmem>>, %arg7: memref<1x1xf32, #tpu.memory_space<smem>>, %arg8: memref<8x1xf32, #tpu.memory_space<vmem>>) attributes {dimension_semantics = [#tpu.dimension_semantics<parallel>], iteration_bounds = array<i64: 1>, scalar_prefetch = 0 : i64, scratch_operands = 0 : i64, tpu.core_type = #tpu.core_type<tc>, window_params = [{transform_indices = @transform_0, window_bounds = array<i64: 8, 10>}, {pipeline_mode = #tpu.pipeline_mode<synchronous>, transform_indices = @transform_1, window_bounds = array<i64: 10, 512>}, {pipeline_mode = #tpu.pipeline_mode<synchronous>, transform_indices = @transform_2, window_bounds = array<i64: 1, 512>}, {pipeline_mode = #tpu.pipeline_mode<synchronous>, transform_indices = @transform_3, window_bounds = array<i64: 512, 512>}, {pipeline_mode = #tpu.pipeline_mode<synchronous>, transform_indices = @transform_4, window_bounds = array<i64: 1, 512>}, {pipeline_mode = #tpu.pipeline_mode<synchronous>, transform_indices = @transform_5, window_bounds = array<i64: 1, 512>}, {transform_indices = @transform_6, window_bounds = array<i64: 1, 1>}, {transform_indices = @transform_7, window_bounds = array<i64: 8, 1>}]} {
    %c0 = arith.constant 0 : index
    %c0_0 = arith.constant 0 : index
    %0 = vector.load %arg1[%c0, %c0_0] : memref<8x10xf32, #tpu.memory_space<vmem>>, vector<8x10xf32>
    %1 = arith.truncf %0 : vector<8x10xf32> to vector<8x10xbf16>
    %c0_1 = arith.constant 0 : index
    %c0_2 = arith.constant 0 : index
    %2 = vector.load %arg2[%c0_1, %c0_2] : memref<10x512xbf16, #tpu.memory_space<vmem>>, vector<10x512xbf16>
    %cst = arith.constant dense<0.000000e+00> : vector<8x512xf32>
    %3 = tpu.matmul %1, %2, %cst {dimension_numbers = #tpu.dot_dimension_numbers<[1], [0], [0], [1], [0, 0, 1, 1], [], []>} : vector<8x10xbf16>, vector<10x512xbf16>, vector<8x512xf32> -> vector<8x512xf32>
    %c0_3 = arith.constant 0 : index
    %c0_4 = arith.constant 0 : index
    %4 = vector.load %arg3[%c0_3, %c0_4] : memref<1x512xf32, #tpu.memory_space<vmem>>, vector<1x512xf32>
    %5 = vector.broadcast %4 : vector<1x512xf32> to vector<8x512xf32>
    %6 = arith.addf %3, %5 : vector<8x512xf32>
    %cst_5 = arith.constant 0.000000e+00 : f32
    %7 = vector.broadcast %cst_5 : f32 to vector<8x512xf32>
    %8 = arith.maximumf %6, %7 : vector<8x512xf32>
    %9 = arith.truncf %8 : vector<8x512xf32> to vector<8x512xbf16>
    %c0_6 = arith.constant 0 : index
    %c0_7 = arith.constant 0 : index
    %10 = vector.load %arg4[%c0_6, %c0_7] : memref<512x512xbf16, #tpu.memory_space<vmem>>, vector<512x512xbf16>
    %cst_8 = arith.constant dense<0.000000e+00> : vector<8x512xf32>
    %11 = tpu.matmul %9, %10, %cst_8 {dimension_numbers = #tpu.dot_dimension_numbers<[1], [0], [0], [1], [0, 0, 1, 1], [], []>} : vector<8x512xbf16>, vector<512x512xbf16>, vector<8x512xf32> -> vector<8x512xf32>
    %c0_9 = arith.constant 0 : index
    %c0_10 = arith.constant 0 : index
    %12 = vector.load %arg5[%c0_9, %c0_10] : memref<1x512xf32, #tpu.memory_space<vmem>>, vector<1x512xf32>
    %13 = vector.broadcast %12 : vector<1x512xf32> to vector<8x512xf32>
    %14 = arith.addf %11, %13 : vector<8x512xf32>
    %cst_11 = arith.constant 0.000000e+00 : f32
    %15 = vector.broadcast %cst_11 : f32 to vector<8x512xf32>
    %16 = arith.maximumf %14, %15 : vector<8x512xf32>
    %c0_12 = arith.constant 0 : index
    %c0_13 = arith.constant 0 : index
    %17 = vector.load %arg6[%c0_12, %c0_13] : memref<1x512xf32, #tpu.memory_space<vmem>>, vector<1x512xf32>
    %18 = vector.broadcast %17 : vector<1x512xf32> to vector<8x512xf32>
    %19 = arith.mulf %16, %18 : vector<8x512xf32>
    %cst_14 = arith.constant dense<0.000000e+00> : vector<8xf32>
    %20 = vector.multi_reduction <add>, %19, %cst_14 [1] : vector<8x512xf32> to vector<8xf32>
    %21 = vector.shape_cast %20 : vector<8xf32> to vector<8x1xf32>
    %c0_15 = arith.constant 0 : index
    %c0_16 = arith.constant 0 : index
    %22 = memref.load %arg7[%c0_15, %c0_16] : memref<1x1xf32, #tpu.memory_space<smem>>
    %23 = vector.broadcast %22 : f32 to vector<8x1xf32>
    %24 = arith.addf %21, %23 : vector<8x1xf32>
    %25 = arith.negf %24 : vector<8x1xf32>
    %26 = math.exp %25 : vector<8x1xf32>
    %cst_17 = arith.constant 1.000000e+00 : f32
    %27 = vector.broadcast %cst_17 : f32 to vector<8x1xf32>
    %28 = arith.addf %27, %26 : vector<8x1xf32>
    %29 = arith.divf %27, %28 : vector<8x1xf32>
    %c0_18 = arith.constant 0 : index
    %c0_19 = arith.constant 0 : index
    %30 = vector.load %arg8[%c0_18, %c0_19] : memref<8x1xf32, #tpu.memory_space<vmem>>, vector<8x1xf32>
    tpu.vector_store %arg8[%c0_18, %c0_19], %29 {strides = array<i32>} : memref<8x1xf32, #tpu.memory_space<vmem>>, vector<8x1xf32>,
    return
  }
  func.func @transform_0(%arg0: i32) -> (i32, i32) {
    %c0_i32 = arith.constant 0 : i32
    %c0_i32_0 = arith.constant 0 : i32
    return %arg0, %c0_i32 : i32, i32
  }
  func.func @transform_1(%arg0: i32) -> (i32, i32) {
    %c0_i32 = arith.constant 0 : i32
    %c0_i32_0 = arith.constant 0 : i32
    %c0_i32_1 = arith.constant 0 : i32
    return %c0_i32, %c0_i32_0 : i32, i32
  }
  func.func @transform_2(%arg0: i32) -> (i32, i32) {
    %c0_i32 = arith.constant 0 : i32
    %c0_i32_0 = arith.constant 0 : i32
    %c0_i32_1 = arith.constant 0 : i32
    return %c0_i32, %c0_i32_0 : i32, i32
  }
  func.func @transform_3(%arg0: i32) -> (i32, i32) {
    %c0_i32 = arith.constant 0 : i32
    %c0_i32_0 = arith.constant 0 : i32
    %c0_i32_1 = arith.constant 0 : i32
    return %c0_i32, %c0_i32_0 : i32, i32
  }
  func.func @transform_4(%arg0: i32) -> (i32, i32) {
    %c0_i32 = arith.constant 0 : i32
    %c0_i32_0 = arith.constant 0 : i32
    %c0_i32_1 = arith.constant 0 : i32
    return %c0_i32, %c0_i32_0 : i32, i32
  }
  func.func @transform_5(%arg0: i32) -> (i32, i32) {
    %c0_i32 = arith.constant 0 : i32
    %c0_i32_0 = arith.constant 0 : i32
    %c0_i32_1 = arith.constant 0 : i32
    return %c0_i32, %c0_i32_0 : i32, i32
  }
  func.func @transform_6(%arg0: i32) -> (i32, i32) {
    %c0_i32 = arith.constant 0 : i32
    %c0_i32_0 = arith.constant 0 : i32
    %c0_i32_1 = arith.constant 0 : i32
    return %c0_i32, %c0_i32_0 : i32, i32
  }
  func.func @transform_7(%arg0: i32) -> (i32, i32) {
    %c0_i32 = arith.constant 0 : i32
    %c0_i32_0 = arith.constant 0 : i32
    return %arg0, %c0_i32 : i32, i32
  }
}

</mosaic_0001>

<llo_original>
// kernel: tpu_custom_call.1
$region0: #{tpu_custom_call.1}
  #allocation0 [shape = 'u32[]', space=smem, size = 0x4, offset = 0x4, fixed_abs, tag = 'smem constant byte address 0x4 - core index']
  #allocation1 [shape = 'u32[72,128]{1,0:T(1,128)}', space=vmem, size = 0x9000, scoped, tag = 'internal scratch']
  #allocation2 [shape = 'f32[1,1]{1,0:T(1,128)S(6)}', space=smem, size = 0x200, scoped, tag = 'scoped memory for tpu_custom_call.1']
  %s0 = inlined_call_operand.hbm [shape: f32[8,10], index: 0, kind: input, shape index: {}]
  %s1 = inlined_call_operand.hbm [shape: bf16[10,512], index: 1, kind: input, shape index: {}]
  %s2 = inlined_call_operand.hbm [shape: f32[1,512], index: 2, kind: input, shape index: {}]
  %s3 = inlined_call_operand.hbm [shape: bf16[512,512], index: 3, kind: input, shape index: {}]
  %s4 = inlined_call_operand.vmem [shape: f32[1,512], index: 4, kind: input, shape index: {}]
  %s5 = inlined_call_operand.hbm [shape: f32[1,512], index: 5, kind: input, shape index: {}]
  %s6 = inlined_call_operand.<no memory space> [shape: f32[1,1], index: 6, kind: input, shape index: {}]
  %s7 = inlined_call_operand.vmem [shape: f32[8,1], index: 7, kind: output, shape index: {}]
  %s8 = sld [smem:[#allocation0]]
  $region58: #{tpu_custom_call.1} parent=0
    _
  %s10 = ssub.s32 1, %s8
  %s11 = scalar_select 0, %s10, %s8
  %12 = sst [smem:[#allocation2]] %s6
  $region1: #{tpu_custom_call.1} parent=0
    #allocation3 [shape = 'u8[4096]{0}', space=vmem, size = 0x1000, scoped, tag = 'input window, operand 0, single buffered']
    #allocation4 [shape = 's32[1]{0}', space=sflag, size = 0x4, scoped, tag = 'scoped memory for tpu_custom_call.1']
    #allocation5 [shape = 'u8[16384]{0}', space=vmem, size = 0x4000, scoped, tag = 'input window, operand 1, single buffered']
    #allocation6 [shape = 's32[1]{0}', space=sflag, size = 0x4, scoped, tag = 'scoped memory for tpu_custom_call.1']
    #allocation7 [shape = 'u8[2048]{0}', space=vmem, size = 0x800, scoped, tag = 'input window, operand 2, single buffered']
    #allocation8 [shape = 'u8[524288]{0}', space=vmem, size = 0x80000, scoped, tag = 'input window, operand 3, single buffered']
    #allocation9 [shape = 's32[1]{0}', space=sflag, size = 0x4, scoped, tag = 'scoped memory for tpu_custom_call.1']
    #allocation10 [shape = 'u8[2048]{0}', space=vmem, size = 0x800, scoped, tag = 'input window, operand 5, single buffered']
    %13 = vsyncpa [#allocation4], 0
    %14 = vsyncpa [#allocation6], 0
    %15 = vsyncpa [#allocation9], 0
    // Predicated region
    $region2: #{tpu_custom_call.1} parent=1 // pred_check
      _
    $region3: #{tpu_custom_call.1} parent=1 // pred_check_branch
      %17 = sbr.rel (0) target = $region5
    $region4: #{tpu_custom_call.1} parent=1 // pred_region
      %19 = vsyncadd [#allocation4], 0
      %s21 = sshll.u32 %s0, 4
      %s22 = int_to_ptr.hbm [resolvable:$true] %s21
      %s23 = sshll.u32 [#allocation3], 4
      %s24 = int_to_ptr.vmem [resolvable:$true] %s23
      %26 = dma.hbm_to_vmem [thread:$0]  %s22, 128, %s24, [#allocation4]
    $region5: #{tpu_custom_call.1} parent=1 // pred_fallthru
      _
    // Predicated region
    $region6: #{tpu_custom_call.1} parent=1 // pred_check
      _
    $region7: #{tpu_custom_call.1} parent=1 // pred_check_branch
      %28 = sbr.rel (0) target = $region9
    $region8: #{tpu_custom_call.1} parent=1 // pred_region
      %30 = vsyncadd [#allocation6], 0
      %s31 = sshll.u32 %s1, 4
      %s32 = int_to_ptr.hbm [resolvable:$true] %s31
      %s33 = sshll.u32 [#allocation5], 4
      %s34 = int_to_ptr.vmem [resolvable:$true] %s33
      %39 = dma.hbm_to_vmem [thread:$0]  %s32, 512, %s34, [#allocation6], 256, 256, 16
    $region9: #{tpu_custom_call.1} parent=1 // pred_fallthru
      _
    // Predicated region
    $region10: #{tpu_custom_call.1} parent=1 // pred_check
      _
    $region11: #{tpu_custom_call.1} parent=1 // pred_check_branch
      %41 = sbr.rel (0) target = $region13
    $region12: #{tpu_custom_call.1} parent=1 // pred_region
      %43 = vsyncadd [#allocation6], 0
      %s45 = sshll.u32 %s2, 4
      %s46 = int_to_ptr.hbm [resolvable:$true] %s45
      %s47 = sshll.u32 [#allocation7], 4
      %s48 = int_to_ptr.vmem [resolvable:$true] %s47
      %50 = dma.hbm_to_vmem [thread:$0]  %s46, 64, %s48, [#allocation6]
    $region13: #{tpu_custom_call.1} parent=1 // pred_fallthru
      _
    // Predicated region
    $region14: #{tpu_custom_call.1} parent=1 // pred_check
      _
    $region15: #{tpu_custom_call.1} parent=1 // pred_check_branch
      %52 = sbr.rel (0) target = $region17
    $region16: #{tpu_custom_call.1} parent=1 // pred_region
      %54 = vsyncadd [#allocation9], 0
      %s55 = sshll.u32 %s3, 4
      %s56 = int_to_ptr.hbm [resolvable:$true] %s55
      %s57 = sshll.u32 [#allocation8], 4
      %s58 = int_to_ptr.vmem [resolvable:$true] %s57
      %63 = dma.hbm_to_vmem [thread:$0]  %s56, 16384, %s58, [#allocation9], 256, 256, 16
    $region17: #{tpu_custom_call.1} parent=1 // pred_fallthru
      _
    // Predicated region
    $region18: #{tpu_custom_call.1} parent=1 // pred_check
      _
    $region19: #{tpu_custom_call.1} parent=1 // pred_check_branch
      %65 = sbr.rel (0) target = $region21
    $region20: #{tpu_custom_call.1} parent=1 // pred_region
      _
    $region21: #{tpu_custom_call.1} parent=1 // pred_fallthru
      _
    // Predicated region
    $region22: #{tpu_custom_call.1} parent=1 // pred_check
      _
    $region23: #{tpu_custom_call.1} parent=1 // pred_check_branch
      %67 = sbr.rel (0) target = $region25
    $region24: #{tpu_custom_call.1} parent=1 // pred_region
      %69 = vsyncadd [#allocation9], 0
      %s71 = sshll.u32 %s5, 4
      %s72 = int_to_ptr.hbm [resolvable:$true] %s71
      %s73 = sshll.u32 [#allocation10], 4
      %s74 = int_to_ptr.vmem [resolvable:$true] %s73
      %76 = dma.hbm_to_vmem [thread:$0]  %s72, 64, %s74, [#allocation9]
    $region25: #{tpu_custom_call.1} parent=1 // pred_fallthru
      _
    // Predicated region
    $region26: #{tpu_custom_call.1} parent=1 // pred_check
      _
    $region27: #{tpu_custom_call.1} parent=1 // pred_check_branch
      %78 = sbr.rel (0) target = $region29
    $region28: #{tpu_custom_call.1} parent=1 // pred_region
      _
    $region29: #{tpu_custom_call.1} parent=1 // pred_fallthru
      _
    // Predicated region
    $region30: #{tpu_custom_call.1} parent=1 // pred_check
      _
    $region31: #{tpu_custom_call.1} parent=1 // pred_check_branch
      %80 = sbr.rel (0) target = $region33
    $region32: #{tpu_custom_call.1} parent=1 // pred_region
      %82 = dma.done [#allocation4], 128
    $region33: #{tpu_custom_call.1} parent=1 // pred_fallthru
      _
    // Predicated region
    $region34: #{tpu_custom_call.1} parent=1 // pred_check
      _
    $region35: #{tpu_custom_call.1} parent=1 // pred_check_branch
      %84 = sbr.rel (0) target = $region37
    $region36: #{tpu_custom_call.1} parent=1 // pred_region
      %86 = dma.done [#allocation6], 512
    $region37: #{tpu_custom_call.1} parent=1 // pred_fallthru
      _
    // Predicated region
    $region38: #{tpu_custom_call.1} parent=1 // pred_check
      _
    $region39: #{tpu_custom_call.1} parent=1 // pred_check_branch
      %88 = sbr.rel (0) target = $region41
    $region40: #{tpu_custom_call.1} parent=1 // pred_region
      %90 = dma.done [#allocation6], 64
    $region41: #{tpu_custom_call.1} parent=1 // pred_fallthru
      _
    // Predicated region
    $region42: #{tpu_custom_call.1} parent=1 // pred_check
      _
    $region43: #{tpu_custom_call.1} parent=1 // pred_check_branch
      %92 = sbr.rel (0) target = $region45
    $region44: #{tpu_custom_call.1} parent=1 // pred_region
      %94 = dma.done [#allocation9], 16384
    $region45: #{tpu_custom_call.1} parent=1 // pred_fallthru
      _
    // Predicated region
    $region46: #{tpu_custom_call.1} parent=1 // pred_check
      _
    $region47: #{tpu_custom_call.1} parent=1 // pred_check_branch
      %96 = sbr.rel (0) target = $region49
    $region48: #{tpu_custom_call.1} parent=1 // pred_region
      %98 = dma.done [#allocation9], 64
    $region49: #{tpu_custom_call.1} parent=1 // pred_fallthru
      _
    %v100 = vld [vmem:[#allocation3] sm:$0xff]
    %v101 = vpack.c.bf16 %v100, %v100
    %v102 = vld [vmem:[#allocation5] sm:$0xff]
    %v103 = vld [vmem:[#allocation5 + $0x8] sm:$0xff]
    %v104 = vld [vmem:[#allocation5 + $0x10] sm:$0x11]
    %v105 = vld [vmem:[#allocation5 + $0x18] sm:$0x11]
    %v106 = vld [vmem:[#allocation7] sm:$0xf]
    %v108 = vperm.slane %v106, 0
    %v109 = vperm.slane %v106, 1
    %v110 = vperm.slane %v106, 2
    %v111 = vperm.slane %v106, 3
    %v120 = vunpack.c.l.b16 %v102
    %v121 = vunpack.c.h.b16 %v102
    %v122 = vunpack.c.l.b16 %v103
    %v123 = vunpack.c.h.b16 %v103
    %v124 = vunpack.c.l.b16 %v104
    %v125 = vunpack.c.h.b16 %v104
    %v126 = vunpack.c.l.b16 %v105
    %v127 = vunpack.c.h.b16 %v105
    %v128 = vpack.c.b16 %v124, %v120
    %v129 = vpack.c.b16 %v125, %v121
    %v130 = vpack.c.b16 %v126, %v122
    %v131 = vpack.c.b16 %v127, %v123
    %vm132 = vcmask 80896
    %v134 = vsel %vm132, %v101, 0
    %vm136 = vcmask 1044480
    %v138 = vsel %vm136, %v128, 0
    %v141 = vsel %vm136, %v129, 0
    %v144 = vsel %vm136, %v130, 0
    %v147 = vsel %vm136, %v131, 0
    %149 = vmatpush.bf16.msra.mxu0 0
    %150 = vmatpush.bf16.msra.mxu0 0
    %151 = vmatpush.bf16.msra.mxu0 0
    %152 = vmatpush.bf16.msra.mxu0 0
    %153 = vmatpush.bf16.msra.mxu0 0
    %154 = vmatpush.bf16.msra.mxu0 0
    %155 = vmatpush.bf16.msra.mxu0 0
    %156 = vmatpush.bf16.msra.mxu0 %v138
    %157 = vmatmul.bf16.gmra.mxu0 %v134
    %v158 = vpop.f32.mrf.mxu0
    %v159 = vadd.f32 %v108, %v158
    %v160 = vpop.f32.mrf.mxu0
    %161 = vdwg.mxu0
    %162 = vmatpush.bf16.msra.mxu0 0
    %163 = vmatpush.bf16.msra.mxu0 0
    %164 = vmatpush.bf16.msra.mxu0 0
    %165 = vmatpush.bf16.msra.mxu0 0
    %166 = vmatpush.bf16.msra.mxu0 0
    %167 = vmatpush.bf16.msra.mxu0 0
    %168 = vmatpush.bf16.msra.mxu0 0
    %169 = vmatpush.bf16.msra.mxu0 %v141
    %170 = vmatmul.bf16.gmra.mxu0 %v134
    %v171 = vpop.f32.mrf.mxu0
    %v172 = vadd.f32 %v109, %v171
    %v173 = vpop.f32.mrf.mxu0
    %174 = vdwg.mxu0
    %175 = vmatpush.bf16.msra.mxu0 0
    %176 = vmatpush.bf16.msra.mxu0 0
    %177 = vmatpush.bf16.msra.mxu0 0
    %178 = vmatpush.bf16.msra.mxu0 0
    %179 = vmatpush.bf16.msra.mxu0 0
    %180 = vmatpush.bf16.msra.mxu0 0
    %181 = vmatpush.bf16.msra.mxu0 0
    %182 = vmatpush.bf16.msra.mxu0 %v144
    %183 = vmatmul.bf16.gmra.mxu0 %v134
    %v184 = vpop.f32.mrf.mxu0
    %v185 = vadd.f32 %v110, %v184
    %v186 = vpop.f32.mrf.mxu0
    %187 = vdwg.mxu0
    %188 = vmatpush.bf16.msra.mxu0 0
    %189 = vmatpush.bf16.msra.mxu0 0
    %190 = vmatpush.bf16.msra.mxu0 0
    %191 = vmatpush.bf16.msra.mxu0 0
    %192 = vmatpush.bf16.msra.mxu0 0
    %193 = vmatpush.bf16.msra.mxu0 0
    %194 = vmatpush.bf16.msra.mxu0 0
    %195 = vmatpush.bf16.msra.mxu0 %v147
    %196 = vmatmul.bf16.gmra.mxu0 %v134
    %v197 = vpop.f32.mrf.mxu0
    %v198 = vadd.f32 %v111, %v197
    %v199 = vpop.f32.mrf.mxu0
    %200 = vdwg.mxu0
    %v201 = vmax.f32 %v159, 0.0
    %v202 = vmax.f32 %v172, 0.0
    %v203 = vmax.f32 %v185, 0.0
    %v204 = vmax.f32 %v198, 0.0
    %v205 = vpack.c.bf16 %v201, %v201
    %v206 = vpack.c.bf16 %v202, %v202
    %v207 = vpack.c.bf16 %v203, %v203
    %v208 = vpack.c.bf16 %v204, %v204
    %v209 = vld [vmem:[#allocation8] sm:$0xff]
    %v210 = vld [vmem:[#allocation8 + $0x8] sm:$0xff]
    %v211 = vld [vmem:[#allocation8 + $0x10] sm:$0xff]
    %v212 = vld [vmem:[#allocation8 + $0x18] sm:$0xff]
    %v213 = vld [vmem:[#allocation8 + $0x20] sm:$0xff]
    %v214 = vld [vmem:[#allocation8 + $0x28] sm:$0xff]
    %v215 = vld [vmem:[#allocation8 + $0x30] sm:$0xff]
    %v216 = vld [vmem:[#allocation8 + $0x38] sm:$0xff]
    %v217 = vld [vmem:[#allocation8 + $0x40] sm:$0xff]
    %v218 = vld [vmem:[#allocation8 + $0x48] sm:$0xff]
    %v219 = vld [vmem:[#allocation8 + $0x50] sm:$0xff]
    %v220 = vld [vmem:[#allocation8 + $0x58] sm:$0xff]
    %v221 = vld [vmem:[#allocation8 + $0x60] sm:$0xff]
    %v222 = vld [vmem:[#allocation8 + $0x68] sm:$0xff]
    %v223 = vld [vmem:[#allocation8 + $0x70] sm:$0xff]
    %v224 = vld [vmem:[#allocation8 + $0x78] sm:$0xff]
    %v225 = vld [vmem:[#allocation8 + $0x80] sm:$0xff]
    %v226 = vld [vmem:[#allocation8 + $0x88] sm:$0xff]
    %v227 = vld [vmem:[#allocation8 + $0x90] sm:$0xff]
    %v228 = vld [vmem:[#allocation8 + $0x98] sm:$0xff]
    %v229 = vld [vmem:[#allocation8 + $0xa0] sm:$0xff]
    %v230 = vld [vmem:[#allocation8 + $0xa8] sm:$0xff]
    %v231 = vld [vmem:[#allocation8 + $0xb0] sm:$0xff]
    %v232 = vld [vmem:[#allocation8 + $0xb8] sm:$0xff]
    %v233 = vld [vmem:[#allocation8 + $0xc0] sm:$0xff]
    %v234 = vld [vmem:[#allocation8 + $0xc8] sm:$0xff]
    %v235 = vld [vmem:[#allocation8 + $0xd0] sm:$0xff]
    %v236 = vld [vmem:[#allocation8 + $0xd8] sm:$0xff]
    %v237 = vld [vmem:[#allocation8 + $0xe0] sm:$0xff]
    %v238 = vld [vmem:[#allocation8 + $0xe8] sm:$0xff]
    %v239 = vld [vmem:[#allocation8 + $0xf0] sm:$0xff]
    %v240 = vld [vmem:[#allocation8 + $0xf8] sm:$0xff]
    %v241 = vld [vmem:[#allocation8 + $0x100] sm:$0xff]
    %v242 = vld [vmem:[#allocation8 + $0x108] sm:$0xff]
    %v243 = vld [vmem:[#allocation8 + $0x110] sm:$0xff]
    %v244 = vld [vmem:[#allocation8 + $0x118] sm:$0xff]
    %v245 = vld [vmem:[#allocation8 + $0x120] sm:$0xff]
    %v246 = vld [vmem:[#allocation8 + $0x128] sm:$0xff]
    %v247 = vld [vmem:[#allocation8 + $0x130] sm:$0xff]
    %v248 = vld [vmem:[#allocation8 + $0x138] sm:$0xff]
    %v249 = vld [vmem:[#allocation8 + $0x140] sm:$0xff]
    %v250 = vld [vmem:[#allocation8 + $0x148] sm:$0xff]
    %v251 = vld [vmem:[#allocation8 + $0x150] sm:$0xff]
    %v252 = vld [vmem:[#allocation8 + $0x158] sm:$0xff]
    %v253 = vld [vmem:[#allocation8 + $0x160] sm:$0xff]
    %v254 = vld [vmem:[#allocation8 + $0x168] sm:$0xff]
    %v255 = vld [vmem:[#allocation8 + $0x170] sm:$0xff]
    %v256 = vld [vmem:[#allocation8 + $0x178] sm:$0xff]
    %v257 = vld [vmem:[#allocation8 + $0x180] sm:$0xff]
    %v258 = vld [vmem:[#allocation8 + $0x188] sm:$0xff]
    %v259 = vld [vmem:[#allocation8 + $0x190] sm:$0xff]
    %v260 = vld [vmem:[#allocation8 + $0x198] sm:$0xff]
    %v261 = vld [vmem:[#allocation8 + $0x1a0] sm:$0xff]
    %v262 = vld [vmem:[#allocation8 + $0x1a8] sm:$0xff]
    %v263 = vld [vmem:[#allocation8 + $0x1b0] sm:$0xff]
    %v264 = vld [vmem:[#allocation8 + $0x1b8] sm:$0xff]
    %v265 = vld [vmem:[#allocation8 + $0x1c0] sm:$0xff]
    %v266 = vld [vmem:[#allocation8 + $0x1c8] sm:$0xff]
    %v267 = vld [vmem:[#allocation8 + $0x1d0] sm:$0xff]
    %v268 = vld [vmem:[#allocation8 + $0x1d8] sm:$0xff]
    %v269 = vld [vmem:[#allocation8 + $0x1e0] sm:$0xff]
    %v270 = vld [vmem:[#allocation8 + $0x1e8] sm:$0xff]
    %v271 = vld [vmem:[#allocation8 + $0x1f0] sm:$0xff]
    %v272 = vld [vmem:[#allocation8 + $0x1f8] sm:$0xff]
    %v273 = vld [vmem:[#allocation8 + $0x200] sm:$0xff]
    %v274 = vld [vmem:[#allocation8 + $0x208] sm:$0xff]
    %v275 = vld [vmem:[#allocation8 + $0x210] sm:$0xff]
    %v276 = vld [vmem:[#allocation8 + $0x218] sm:$0xff]
    %v277 = vld [vmem:[#allocation8 + $0x220] sm:$0xff]
    %v278 = vld [vmem:[#allocation8 + $0x228] sm:$0xff]
    %v279 = vld [vmem:[#allocation8 + $0x230] sm:$0xff]
    %v280 = vld [vmem:[#allocation8 + $0x238] sm:$0xff]
    %v281 = vld [vmem:[#allocation8 + $0x240] sm:$0xff]
    %v282 = vld [vmem:[#allocation8 + $0x248] sm:$0xff]
    %v283 = vld [vmem:[#allocation8 + $0x250] sm:$0xff]
    %v284 = vld [vmem:[#allocation8 + $0x258] sm:$0xff]
    %v285 = vld [vmem:[#allocation8 + $0x260] sm:$0xff]
    %v286 = vld [vmem:[#allocation8 + $0x268] sm:$0xff]
    %v287 = vld [vmem:[#allocation8 + $0x270] sm:$0xff]
    %v288 = vld [vmem:[#allocation8 + $0x278] sm:$0xff]
    %v289 = vld [vmem:[#allocation8 + $0x280] sm:$0xff]
    %v290 = vld [vmem:[#allocation8 + $0x288] sm:$0xff]
    %v291 = vld [vmem:[#allocation8 + $0x290] sm:$0xff]
    %v292 = vld [vmem:[#allocation8 + $0x298] sm:$0xff]
    %v293 = vld [vmem:[#allocation8 + $0x2a0] sm:$0xff]
    %v294 = vld [vmem:[#allocation8 + $0x2a8] sm:$0xff]
    %v295 = vld [vmem:[#allocation8 + $0x2b0] sm:$0xff]
    %v296 = vld [vmem:[#allocation8 + $0x2b8] sm:$0xff]
    %v297 = vld [vmem:[#allocation8 + $0x2c0] sm:$0xff]
    %v298 = vld [vmem:[#allocation8 + $0x2c8] sm:$0xff]
    %v299 = vld [vmem:[#allocation8 + $0x2d0] sm:$0xff]
    %v300 = vld [vmem:[#allocation8 + $0x2d8] sm:$0xff]
    %v301 = vld [vmem:[#allocation8 + $0x2e0] sm:$0xff]
    %v302 = vld [vmem:[#allocation8 + $0x2e8] sm:$0xff]
    %v303 = vld [vmem:[#allocation8 + $0x2f0] sm:$0xff]
    %v304 = vld [vmem:[#allocation8 + $0x2f8] sm:$0xff]
    %v305 = vld [vmem:[#allocation8 + $0x300] sm:$0xff]
    %v306 = vld [vmem:[#allocation8 + $0x308] sm:$0xff]
    %v307 = vld [vmem:[#allocation8 + $0x310] sm:$0xff]
    %v308 = vld [vmem:[#allocation8 + $0x318] sm:$0xff]
    %v309 = vld [vmem:[#allocation8 + $0x320] sm:$0xff]
    %v310 = vld [vmem:[#allocation8 + $0x328] sm:$0xff]
    %v311 = vld [vmem:[#allocation8 + $0x330] sm:$0xff]
    %v312 = vld [vmem:[#allocation8 + $0x338] sm:$0xff]
    %v313 = vld [vmem:[#allocation8 + $0x340] sm:$0xff]
    %v314 = vld [vmem:[#allocation8 + $0x348] sm:$0xff]
    %v315 = vld [vmem:[#allocation8 + $0x350] sm:$0xff]
    %v316 = vld [vmem:[#allocation8 + $0x358] sm:$0xff]
    %v317 = vld [vmem:[#allocation8 + $0x360] sm:$0xff]
    %v318 = vld [vmem:[#allocation8 + $0x368] sm:$0xff]
    %v319 = vld [vmem:[#allocation8 + $0x370] sm:$0xff]
    %v320 = vld [vmem:[#allocation8 + $0x378] sm:$0xff]
    %v321 = vld [vmem:[#allocation8 + $0x380] sm:$0xff]
    %v322 = vld [vmem:[#allocation8 + $0x388] sm:$0xff]
    %v323 = vld [vmem:[#allocation8 + $0x390] sm:$0xff]
    %v324 = vld [vmem:[#allocation8 + $0x398] sm:$0xff]
    %v325 = vld [vmem:[#allocation8 + $0x3a0] sm:$0xff]
    %v326 = vld [vmem:[#allocation8 + $0x3a8] sm:$0xff]
    %v327 = vld [vmem:[#allocation8 + $0x3b0] sm:$0xff]
    %v328 = vld [vmem:[#allocation8 + $0x3b8] sm:$0xff]
    %v329 = vld [vmem:[#allocation8 + $0x3c0] sm:$0xff]
    %v330 = vld [vmem:[#allocation8 + $0x3c8] sm:$0xff]
    %v331 = vld [vmem:[#allocation8 + $0x3d0] sm:$0xff]
    %v332 = vld [vmem:[#allocation8 + $0x3d8] sm:$0xff]
    %v333 = vld [vmem:[#allocation8 + $0x3e0] sm:$0xff]
    %v334 = vld [vmem:[#allocation8 + $0x3e8] sm:$0xff]
    %v335 = vld [vmem:[#allocation8 + $0x3f0] sm:$0xff]
    %v336 = vld [vmem:[#allocation8 + $0x3f8] sm:$0xff]
    %v337 = vld [vmem:[%s4] sm:$0xf]
    %v339 = vperm.slane %v337, 0
    %v340 = vperm.slane %v337, 1
    %v341 = vperm.slane %v337, 2
    %v342 = vperm.slane %v337, 3
    %v475 = vunpack.c.l.b16 %v209
    %v476 = vunpack.c.h.b16 %v209
    %v477 = vunpack.c.l.b16 %v210
    %v478 = vunpack.c.h.b16 %v210
    %v479 = vunpack.c.l.b16 %v211
    %v480 = vunpack.c.h.b16 %v211
    %v481 = vunpack.c.l.b16 %v212
    %v482 = vunpack.c.h.b16 %v212
    %v483 = vunpack.c.l.b16 %v213
    %v484 = vunpack.c.h.b16 %v213
    %v485 = vunpack.c.l.b16 %v214
    %v486 = vunpack.c.h.b16 %v214
    %v487 = vunpack.c.l.b16 %v215
    %v488 = vunpack.c.h.b16 %v215
    %v489 = vunpack.c.l.b16 %v216
    %v490 = vunpack.c.h.b16 %v216
    %v491 = vunpack.c.l.b16 %v217
    %v492 = vunpack.c.h.b16 %v217
    %v493 = vunpack.c.l.b16 %v218
    %v494 = vunpack.c.h.b16 %v218
    %v495 = vunpack.c.l.b16 %v219
    %v496 = vunpack.c.h.b16 %v219
    %v497 = vunpack.c.l.b16 %v220
    %v498 = vunpack.c.h.b16 %v220
    %v499 = vunpack.c.l.b16 %v221
    %v500 = vunpack.c.h.b16 %v221
    %v501 = vunpack.c.l.b16 %v222
    %v502 = vunpack.c.h.b16 %v222
    %v503 = vunpack.c.l.b16 %v223
    %v504 = vunpack.c.h.b16 %v223
    %v505 = vunpack.c.l.b16 %v224
    %v506 = vunpack.c.h.b16 %v224
    %v507 = vunpack.c.l.b16 %v225
    %v508 = vunpack.c.h.b16 %v225
    %v509 = vunpack.c.l.b16 %v226
    %v510 = vunpack.c.h.b16 %v226
    %v511 = vunpack.c.l.b16 %v227
    %v512 = vunpack.c.h.b16 %v227
    %v513 = vunpack.c.l.b16 %v228
    %v514 = vunpack.c.h.b16 %v228
    %v515 = vunpack.c.l.b16 %v229
    %v516 = vunpack.c.h.b16 %v229
    %v517 = vunpack.c.l.b16 %v230
    %v518 = vunpack.c.h.b16 %v230
    %v519 = vunpack.c.l.b16 %v231
    %v520 = vunpack.c.h.b16 %v231
    %v521 = vunpack.c.l.b16 %v232
    %v522 = vunpack.c.h.b16 %v232
    %v523 = vunpack.c.l.b16 %v233
    %v524 = vunpack.c.h.b16 %v233
    %v525 = vunpack.c.l.b16 %v234
    %v526 = vunpack.c.h.b16 %v234
    %v527 = vunpack.c.l.b16 %v235
    %v528 = vunpack.c.h.b16 %v235
    %v529 = vunpack.c.l.b16 %v236
    %v530 = vunpack.c.h.b16 %v236
    %v531 = vunpack.c.l.b16 %v237
    %v532 = vunpack.c.h.b16 %v237
    %v533 = vunpack.c.l.b16 %v238
    %v534 = vunpack.c.h.b16 %v238
    %v535 = vunpack.c.l.b16 %v239
    %v536 = vunpack.c.h.b16 %v239
    %v537 = vunpack.c.l.b16 %v240
    %v538 = vunpack.c.h.b16 %v240
    %v539 = vunpack.c.l.b16 %v241
    %v540 = vunpack.c.h.b16 %v241
    %v541 = vunpack.c.l.b16 %v242
    %v542 = vunpack.c.h.b16 %v242
    %v543 = vunpack.c.l.b16 %v243
    %v544 = vunpack.c.h.b16 %v243
    %v545 = vunpack.c.l.b16 %v244
    %v546 = vunpack.c.h.b16 %v244
    %v547 = vunpack.c.l.b16 %v245
    %v548 = vunpack.c.h.b16 %v245
    %v549 = vunpack.c.l.b16 %v246
    %v550 = vunpack.c.h.b16 %v246
    %v551 = vunpack.c.l.b16 %v247
    %v552 = vunpack.c.h.b16 %v247
    %v553 = vunpack.c.l.b16 %v248
    %v554 = vunpack.c.h.b16 %v248
    %v555 = vunpack.c.l.b16 %v249
    %v556 = vunpack.c.h.b16 %v249
    %v557 = vunpack.c.l.b16 %v250
    %v558 = vunpack.c.h.b16 %v250
    %v559 = vunpack.c.l.b16 %v251
    %v560 = vunpack.c.h.b16 %v251
    %v561 = vunpack.c.l.b16 %v252
    %v562 = vunpack.c.h.b16 %v252
    %v563 = vunpack.c.l.b16 %v253
    %v564 = vunpack.c.h.b16 %v253
    %v565 = vunpack.c.l.b16 %v254
    %v566 = vunpack.c.h.b16 %v254
    %v567 = vunpack.c.l.b16 %v255
    %v568 = vunpack.c.h.b16 %v255
    %v569 = vunpack.c.l.b16 %v256
    %v570 = vunpack.c.h.b16 %v256
    %v571 = vunpack.c.l.b16 %v257
    %v572 = vunpack.c.h.b16 %v257
    %v573 = vunpack.c.l.b16 %v258
    %v574 = vunpack.c.h.b16 %v258
    %v575 = vunpack.c.l.b16 %v259
    %v576 = vunpack.c.h.b16 %v259
    %v577 = vunpack.c.l.b16 %v260
    %v578 = vunpack.c.h.b16 %v260
    %v579 = vunpack.c.l.b16 %v261
    %v580 = vunpack.c.h.b16 %v261
    %v581 = vunpack.c.l.b16 %v262
    %v582 = vunpack.c.h.b16 %v262
    %v583 = vunpack.c.l.b16 %v263
    %v584 = vunpack.c.h.b16 %v263
    %v585 = vunpack.c.l.b16 %v264
    %v586 = vunpack.c.h.b16 %v264
    %v587 = vunpack.c.l.b16 %v265
    %v588 = vunpack.c.h.b16 %v265
    %v589 = vunpack.c.l.b16 %v266
    %v590 = vunpack.c.h.b16 %v266
    %v591 = vunpack.c.l.b16 %v267
    %v592 = vunpack.c.h.b16 %v267
    %v593 = vunpack.c.l.b16 %v268
    %v594 = vunpack.c.h.b16 %v268
    %v595 = vunpack.c.l.b16 %v269
    %v596 = vunpack.c.h.b16 %v269
    %v597 = vunpack.c.l.b16 %v270
    %v598 = vunpack.c.h.b16 %v270
    %v599 = vunpack.c.l.b16 %v271
    %v600 = vunpack.c.h.b16 %v271
    %v601 = vunpack.c.l.b16 %v272
    %v602 = vunpack.c.h.b16 %v272
    %v603 = vunpack.c.l.b16 %v273
    %v604 = vunpack.c.h.b16 %v273
    %v605 = vunpack.c.l.b16 %v274
    %v606 = vunpack.c.h.b16 %v274
    %v607 = vunpack.c.l.b16 %v275
    %v608 = vunpack.c.h.b16 %v275
    %v609 = vunpack.c.l.b16 %v276
    %v610 = vunpack.c.h.b16 %v276
    %v611 = vunpack.c.l.b16 %v277
    %v612 = vunpack.c.h.b16 %v277
    %v613 = vunpack.c.l.b16 %v278
    %v614 = vunpack.c.h.b16 %v278
    %v615 = vunpack.c.l.b16 %v279
    %v616 = vunpack.c.h.b16 %v279
    %v617 = vunpack.c.l.b16 %v280
    %v618 = vunpack.c.h.b16 %v280
    %v619 = vunpack.c.l.b16 %v281
    %v620 = vunpack.c.h.b16 %v281
    %v621 = vunpack.c.l.b16 %v282
    %v622 = vunpack.c.h.b16 %v282
    %v623 = vunpack.c.l.b16 %v283
    %v624 = vunpack.c.h.b16 %v283
    %v625 = vunpack.c.l.b16 %v284
    %v626 = vunpack.c.h.b16 %v284
    %v627 = vunpack.c.l.b16 %v285
    %v628 = vunpack.c.h.b16 %v285
    %v629 = vunpack.c.l.b16 %v286
    %v630 = vunpack.c.h.b16 %v286
    %v631 = vunpack.c.l.b16 %v287
    %v632 = vunpack.c.h.b16 %v287
    %v633 = vunpack.c.l.b16 %v288
    %v634 = vunpack.c.h.b16 %v288
    %v635 = vunpack.c.l.b16 %v289
    %v636 = vunpack.c.h.b16 %v289
    %v637 = vunpack.c.l.b16 %v290
    %v638 = vunpack.c.h.b16 %v290
    %v639 = vunpack.c.l.b16 %v291
    %v640 = vunpack.c.h.b16 %v291
    %v641 = vunpack.c.l.b16 %v292
    %v642 = vunpack.c.h.b16 %v292
    %v643 = vunpack.c.l.b16 %v293
    %v644 = vunpack.c.h.b16 %v293
    %v645 = vunpack.c.l.b16 %v294
    %v646 = vunpack.c.h.b16 %v294
    %v647 = vunpack.c.l.b16 %v295
    %v648 = vunpack.c.h.b16 %v295
    %v649 = vunpack.c.l.b16 %v296
    %v650 = vunpack.c.h.b16 %v296
    %v651 = vunpack.c.l.b16 %v297
    %v652 = vunpack.c.h.b16 %v297
    %v653 = vunpack.c.l.b16 %v298
    %v654 = vunpack.c.h.b16 %v298
    %v655 = vunpack.c.l.b16 %v299
    %v656 = vunpack.c.h.b16 %v299
    %v657 = vunpack.c.l.b16 %v300
    %v658 = vunpack.c.h.b16 %v300
    %v659 = vunpack.c.l.b16 %v301
    %v660 = vunpack.c.h.b16 %v301
    %v661 = vunpack.c.l.b16 %v302
    %v662 = vunpack.c.h.b16 %v302
    %v663 = vunpack.c.l.b16 %v303
    %v664 = vunpack.c.h.b16 %v303
    %v665 = vunpack.c.l.b16 %v304
    %v666 = vunpack.c.h.b16 %v304
    %v667 = vunpack.c.l.b16 %v305
    %v668 = vunpack.c.h.b16 %v305
    %v669 = vunpack.c.l.b16 %v306
    %v670 = vunpack.c.h.b16 %v306
    %v671 = vunpack.c.l.b16 %v307
    %v672 = vunpack.c.h.b16 %v307
    %v673 = vunpack.c.l.b16 %v308
    %v674 = vunpack.c.h.b16 %v308
    %v675 = vunpack.c.l.b16 %v309
    %v676 = vunpack.c.h.b16 %v309
    %v677 = vunpack.c.l.b16 %v310
    %v678 = vunpack.c.h.b16 %v310
    %v679 = vunpack.c.l.b16 %v311
    %v680 = vunpack.c.h.b16 %v311
    %v681 = vunpack.c.l.b16 %v312
    %v682 = vunpack.c.h.b16 %v312
    %v683 = vunpack.c.l.b16 %v313
    %v684 = vunpack.c.h.b16 %v313
    %v685 = vunpack.c.l.b16 %v314
    %v686 = vunpack.c.h.b16 %v314
    %v687 = vunpack.c.l.b16 %v315
    %v688 = vunpack.c.h.b16 %v315
    %v689 = vunpack.c.l.b16 %v316
    %v690 = vunpack.c.h.b16 %v316
    %v691 = vunpack.c.l.b16 %v317
    %v692 = vunpack.c.h.b16 %v317
    %v693 = vunpack.c.l.b16 %v318
    %v694 = vunpack.c.h.b16 %v318
    %v695 = vunpack.c.l.b16 %v319
    %v696 = vunpack.c.h.b16 %v319
    %v697 = vunpack.c.l.b16 %v320
    %v698 = vunpack.c.h.b16 %v320
    %v699 = vunpack.c.l.b16 %v321
    %v700 = vunpack.c.h.b16 %v321
    %v701 = vunpack.c.l.b16 %v322
    %v702 = vunpack.c.h.b16 %v322
    %v703 = vunpack.c.l.b16 %v323
    %v704 = vunpack.c.h.b16 %v323
    %v705 = vunpack.c.l.b16 %v324
    %v706 = vunpack.c.h.b16 %v324
    %v707 = vunpack.c.l.b16 %v325
    %v708 = vunpack.c.h.b16 %v325
    %v709 = vunpack.c.l.b16 %v326
    %v710 = vunpack.c.h.b16 %v326
    %v711 = vunpack.c.l.b16 %v327
    %v712 = vunpack.c.h.b16 %v327
    %v713 = vunpack.c.l.b16 %v328
    %v714 = vunpack.c.h.b16 %v328
    %v715 = vunpack.c.l.b16 %v329
    %v716 = vunpack.c.h.b16 %v329
    %v717 = vunpack.c.l.b16 %v330
    %v718 = vunpack.c.h.b16 %v330
    %v719 = vunpack.c.l.b16 %v331
    %v720 = vunpack.c.h.b16 %v331
    %v721 = vunpack.c.l.b16 %v332
    %v722 = vunpack.c.h.b16 %v332
    %v723 = vunpack.c.l.b16 %v333
    %v724 = vunpack.c.h.b16 %v333
    %v725 = vunpack.c.l.b16 %v334
    %v726 = vunpack.c.h.b16 %v334
    %v727 = vunpack.c.l.b16 %v335
    %v728 = vunpack.c.h.b16 %v335
    %v729 = vunpack.c.l.b16 %v336
    %v730 = vunpack.c.h.b16 %v336
    %v731 = vpack.c.b16 %v479, %v475
    %v732 = vpack.c.b16 %v480, %v476
    %v733 = vpack.c.b16 %v481, %v477
    %v734 = vpack.c.b16 %v482, %v478
    %v735 = vpack.c.b16 %v487, %v483
    %v736 = vpack.c.b16 %v488, %v484
    %v737 = vpack.c.b16 %v489, %v485
    %v738 = vpack.c.b16 %v490, %v486
    %v739 = vpack.c.b16 %v495, %v491
    %v740 = vpack.c.b16 %v496, %v492
    %v741 = vpack.c.b16 %v497, %v493
    %v742 = vpack.c.b16 %v498, %v494
    %v743 = vpack.c.b16 %v503, %v499
    %v744 = vpack.c.b16 %v504, %v500
    %v745 = vpack.c.b16 %v505, %v501
    %v746 = vpack.c.b16 %v506, %v502
    %v747 = vpack.c.b16 %v511, %v507
    %v748 = vpack.c.b16 %v512, %v508
    %v749 = vpack.c.b16 %v513, %v509
    %v750 = vpack.c.b16 %v514, %v510
    %v751 = vpack.c.b16 %v519, %v515
    %v752 = vpack.c.b16 %v520, %v516
    %v753 = vpack.c.b16 %v521, %v517
    %v754 = vpack.c.b16 %v522, %v518
    %v755 = vpack.c.b16 %v527, %v523
    %v756 = vpack.c.b16 %v528, %v524
    %v757 = vpack.c.b16 %v529, %v525
    %v758 = vpack.c.b16 %v530, %v526
    %v759 = vpack.c.b16 %v535, %v531
    %v760 = vpack.c.b16 %v536, %v532
    %v761 = vpack.c.b16 %v537, %v533
    %v762 = vpack.c.b16 %v538, %v534
    %v763 = vpack.c.b16 %v543, %v539
    %v764 = vpack.c.b16 %v544, %v540
    %v765 = vpack.c.b16 %v545, %v541
    %v766 = vpack.c.b16 %v546, %v542
    %v767 = vpack.c.b16 %v551, %v547
    %v768 = vpack.c.b16 %v552, %v548
    %v769 = vpack.c.b16 %v553, %v549
    %v770 = vpack.c.b16 %v554, %v550
    %v771 = vpack.c.b16 %v559, %v555
    %v772 = vpack.c.b16 %v560, %v556
    %v773 = vpack.c.b16 %v561, %v557
    %v774 = vpack.c.b16 %v562, %v558
    %v775 = vpack.c.b16 %v567, %v563
    %v776 = vpack.c.b16 %v568, %v564
    %v777 = vpack.c.b16 %v569, %v565
    %v778 = vpack.c.b16 %v570, %v566
    %v779 = vpack.c.b16 %v575, %v571
    %v780 = vpack.c.b16 %v576, %v572
    %v781 = vpack.c.b16 %v577, %v573
    %v782 = vpack.c.b16 %v578, %v574
    %v783 = vpack.c.b16 %v583, %v579
    %v784 = vpack.c.b16 %v584, %v580
    %v785 = vpack.c.b16 %v585, %v581
    %v786 = vpack.c.b16 %v586, %v582
    %v787 = vpack.c.b16 %v591, %v587
    %v788 = vpack.c.b16 %v592, %v588
    %v789 = vpack.c.b16 %v593, %v589
    %v790 = vpack.c.b16 %v594, %v590
    %v791 = vpack.c.b16 %v599, %v595
    %v792 = vpack.c.b16 %v600, %v596
    %v793 = vpack.c.b16 %v601, %v597
    %v794 = vpack.c.b16 %v602, %v598
    %v795 = vpack.c.b16 %v607, %v603
    %v796 = vpack.c.b16 %v608, %v604
    %v797 = vpack.c.b16 %v609, %v605
    %v798 = vpack.c.b16 %v610, %v606
    %v799 = vpack.c.b16 %v615, %v611
    %v800 = vpack.c.b16 %v616, %v612
    %v801 = vpack.c.b16 %v617, %v613
    %v802 = vpack.c.b16 %v618, %v614
    %v803 = vpack.c.b16 %v623, %v619
    %v804 = vpack.c.b16 %v624, %v620
    %v805 = vpack.c.b16 %v625, %v621
    %v806 = vpack.c.b16 %v626, %v622
    %v807 = vpack.c.b16 %v631, %v627
    %v808 = vpack.c.b16 %v632, %v628
    %v809 = vpack.c.b16 %v633, %v629
    %v810 = vpack.c.b16 %v634, %v630
    %v811 = vpack.c.b16 %v639, %v635
    %v812 = vpack.c.b16 %v640, %v636
    %v813 = vpack.c.b16 %v641, %v637
    %v814 = vpack.c.b16 %v642, %v638
    %v815 = vpack.c.b16 %v647, %v643
    %v816 = vpack.c.b16 %v648, %v644
    %v817 = vpack.c.b16 %v649, %v645
    %v818 = vpack.c.b16 %v650, %v646
    %v819 = vpack.c.b16 %v655, %v651
    %v820 = vpack.c.b16 %v656, %v652
    %v821 = vpack.c.b16 %v657, %v653
    %v822 = vpack.c.b16 %v658, %v654
    %v823 = vpack.c.b16 %v663, %v659
    %v824 = vpack.c.b16 %v664, %v660
    %v825 = vpack.c.b16 %v665, %v661
    %v826 = vpack.c.b16 %v666, %v662
    %v827 = vpack.c.b16 %v671, %v667
    %v828 = vpack.c.b16 %v672, %v668
    %v829 = vpack.c.b16 %v673, %v669
    %v830 = vpack.c.b16 %v674, %v670
    %v831 = vpack.c.b16 %v679, %v675
    %v832 = vpack.c.b16 %v680, %v676
    %v833 = vpack.c.b16 %v681, %v677
    %v834 = vpack.c.b16 %v682, %v678
    %v835 = vpack.c.b16 %v687, %v683
    %v836 = vpack.c.b16 %v688, %v684
    %v837 = vpack.c.b16 %v689, %v685
    %v838 = vpack.c.b16 %v690, %v686
    %v839 = vpack.c.b16 %v695, %v691
    %v840 = vpack.c.b16 %v696, %v692
    %v841 = vpack.c.b16 %v697, %v693
    %v842 = vpack.c.b16 %v698, %v694
    %v843 = vpack.c.b16 %v703, %v699
    %v844 = vpack.c.b16 %v704, %v700
    %v845 = vpack.c.b16 %v705, %v701
    %v846 = vpack.c.b16 %v706, %v702
    %v847 = vpack.c.b16 %v711, %v707
    %v848 = vpack.c.b16 %v712, %v708
    %v849 = vpack.c.b16 %v713, %v709
    %v850 = vpack.c.b16 %v714, %v710
    %v851 = vpack.c.b16 %v719, %v715
    %v852 = vpack.c.b16 %v720, %v716
    %v853 = vpack.c.b16 %v721, %v717
    %v854 = vpack.c.b16 %v722, %v718
    %v855 = vpack.c.b16 %v727, %v723
    %v856 = vpack.c.b16 %v728, %v724
    %v857 = vpack.c.b16 %v729, %v725
    %v858 = vpack.c.b16 %v730, %v726
    %987 = vmatpush.bf16.msra.mxu0 %v759
    %988 = vmatpush.bf16.msra.mxu0 %v755
    %989 = vmatpush.bf16.msra.mxu0 %v751
    %990 = vmatpush.bf16.msra.mxu0 %v747
    %991 = vmatpush.bf16.msra.mxu0 %v743
    %992 = vmatpush.bf16.msra.mxu0 %v739
    %993 = vmatpush.bf16.msra.mxu0 %v735
    %994 = vmatpush.bf16.msra.mxu0 %v731
    %995 = vmatmul.bf16.gmra.mxu0 %v205
    %v996 = vpop.f32.mrf.mxu0
    %v997 = vadd.f32 %v339, %v996
    %v998 = vpop.f32.mrf.mxu0
    %999 = vdwg.mxu0
    %1000 = vmatpush.bf16.msra.mxu0 %v791
    %1001 = vmatpush.bf16.msra.mxu0 %v787
    %1002 = vmatpush.bf16.msra.mxu0 %v783
    %1003 = vmatpush.bf16.msra.mxu0 %v779
    %1004 = vmatpush.bf16.msra.mxu0 %v775
    %1005 = vmatpush.bf16.msra.mxu0 %v771
    %1006 = vmatpush.bf16.msra.mxu0 %v767
    %1007 = vmatpush.bf16.msra.mxu0 %v763
    %1008 = vmatmul.bf16.gmra.mxu0 %v206
    %v1009 = vpop.f32.mrf.mxu0
    %v1010 = vadd.f32 %v997, %v1009
    %v1011 = vpop.f32.mrf.mxu0
    %1012 = vdwg.mxu0
    %1013 = vmatpush.bf16.msra.mxu0 %v823
    %1014 = vmatpush.bf16.msra.mxu0 %v819
    %1015 = vmatpush.bf16.msra.mxu0 %v815
    %1016 = vmatpush.bf16.msra.mxu0 %v811
    %1017 = vmatpush.bf16.msra.mxu0 %v807
    %1018 = vmatpush.bf16.msra.mxu0 %v803
    %1019 = vmatpush.bf16.msra.mxu0 %v799
    %1020 = vmatpush.bf16.msra.mxu0 %v795
    %1021 = vmatmul.bf16.gmra.mxu0 %v207
    %v1022 = vpop.f32.mrf.mxu0
    %v1023 = vadd.f32 %v1010, %v1022
    %v1024 = vpop.f32.mrf.mxu0
    %1025 = vdwg.mxu0
    %1026 = vmatpush.bf16.msra.mxu0 %v855
    %1027 = vmatpush.bf16.msra.mxu0 %v851
    %1028 = vmatpush.bf16.msra.mxu0 %v847
    %1029 = vmatpush.bf16.msra.mxu0 %v843
    %1030 = vmatpush.bf16.msra.mxu0 %v839
    %1031 = vmatpush.bf16.msra.mxu0 %v835
    %1032 = vmatpush.bf16.msra.mxu0 %v831
    %1033 = vmatpush.bf16.msra.mxu0 %v827
    %1034 = vmatmul.bf16.gmra.mxu0 %v208
    %v1035 = vpop.f32.mrf.mxu0
    %v1036 = vadd.f32 %v1023, %v1035
    %v1037 = vpop.f32.mrf.mxu0
    %1038 = vdwg.mxu0
    %1039 = vmatpush.bf16.msra.mxu0 %v760
    %1040 = vmatpush.bf16.msra.mxu0 %v756
    %1041 = vmatpush.bf16.msra.mxu0 %v752
    %1042 = vmatpush.bf16.msra.mxu0 %v748
    %1043 = vmatpush.bf16.msra.mxu0 %v744
    %1044 = vmatpush.bf16.msra.mxu0 %v740
    %1045 = vmatpush.bf16.msra.mxu0 %v736
    %1046 = vmatpush.bf16.msra.mxu0 %v732
    %1047 = vmatmul.bf16.gmra.mxu0 %v205
    %v1048 = vpop.f32.mrf.mxu0
    %v1049 = vadd.f32 %v340, %v1048
    %v1050 = vpop.f32.mrf.mxu0
    %1051 = vdwg.mxu0
    %1052 = vmatpush.bf16.msra.mxu0 %v792
    %1053 = vmatpush.bf16.msra.mxu0 %v788
    %1054 = vmatpush.bf16.msra.mxu0 %v784
    %1055 = vmatpush.bf16.msra.mxu0 %v780
    %1056 = vmatpush.bf16.msra.mxu0 %v776
    %1057 = vmatpush.bf16.msra.mxu0 %v772
    %1058 = vmatpush.bf16.msra.mxu0 %v768
    %1059 = vmatpush.bf16.msra.mxu0 %v764
    %1060 = vmatmul.bf16.gmra.mxu0 %v206
    %v1061 = vpop.f32.mrf.mxu0
    %v1062 = vadd.f32 %v1049, %v1061
    %v1063 = vpop.f32.mrf.mxu0
    %1064 = vdwg.mxu0
    %1065 = vmatpush.bf16.msra.mxu0 %v824
    %1066 = vmatpush.bf16.msra.mxu0 %v820
    %1067 = vmatpush.bf16.msra.mxu0 %v816
    %1068 = vmatpush.bf16.msra.mxu0 %v812
    %1069 = vmatpush.bf16.msra.mxu0 %v808
    %1070 = vmatpush.bf16.msra.mxu0 %v804
    %1071 = vmatpush.bf16.msra.mxu0 %v800
    %1072 = vmatpush.bf16.msra.mxu0 %v796
    %1073 = vmatmul.bf16.gmra.mxu0 %v207
    %v1074 = vpop.f32.mrf.mxu0
    %v1075 = vadd.f32 %v1062, %v1074
    %v1076 = vpop.f32.mrf.mxu0
    %1077 = vdwg.mxu0
    %1078 = vmatpush.bf16.msra.mxu0 %v856
    %1079 = vmatpush.bf16.msra.mxu0 %v852
    %1080 = vmatpush.bf16.msra.mxu0 %v848
    %1081 = vmatpush.bf16.msra.mxu0 %v844
    %1082 = vmatpush.bf16.msra.mxu0 %v840
    %1083 = vmatpush.bf16.msra.mxu0 %v836
    %1084 = vmatpush.bf16.msra.mxu0 %v832
    %1085 = vmatpush.bf16.msra.mxu0 %v828
    %1086 = vmatmul.bf16.gmra.mxu0 %v208
    %v1087 = vpop.f32.mrf.mxu0
    %v1088 = vadd.f32 %v1075, %v1087
    %v1089 = vpop.f32.mrf.mxu0
    %1090 = vdwg.mxu0
    %1091 = vmatpush.bf16.msra.mxu0 %v761
    %1092 = vmatpush.bf16.msra.mxu0 %v757
    %1093 = vmatpush.bf16.msra.mxu0 %v753
    %1094 = vmatpush.bf16.msra.mxu0 %v749
    %1095 = vmatpush.bf16.msra.mxu0 %v745
    %1096 = vmatpush.bf16.msra.mxu0 %v741
    %1097 = vmatpush.bf16.msra.mxu0 %v737
    %1098 = vmatpush.bf16.msra.mxu0 %v733
    %1099 = vmatmul.bf16.gmra.mxu0 %v205
    %v1100 = vpop.f32.mrf.mxu0
    %v1101 = vadd.f32 %v341, %v1100
    %v1102 = vpop.f32.mrf.mxu0
    %1103 = vdwg.mxu0
    %1104 = vmatpush.bf16.msra.mxu0 %v793
    %1105 = vmatpush.bf16.msra.mxu0 %v789
    %1106 = vmatpush.bf16.msra.mxu0 %v785
    %1107 = vmatpush.bf16.msra.mxu0 %v781
    %1108 = vmatpush.bf16.msra.mxu0 %v777
    %1109 = vmatpush.bf16.msra.mxu0 %v773
    %1110 = vmatpush.bf16.msra.mxu0 %v769
    %1111 = vmatpush.bf16.msra.mxu0 %v765
    %1112 = vmatmul.bf16.gmra.mxu0 %v206
    %v1113 = vpop.f32.mrf.mxu0
    %v1114 = vadd.f32 %v1101, %v1113
    %v1115 = vpop.f32.mrf.mxu0
    %1116 = vdwg.mxu0
    %1117 = vmatpush.bf16.msra.mxu0 %v825
    %1118 = vmatpush.bf16.msra.mxu0 %v821
    %1119 = vmatpush.bf16.msra.mxu0 %v817
    %1120 = vmatpush.bf16.msra.mxu0 %v813
    %1121 = vmatpush.bf16.msra.mxu0 %v809
    %1122 = vmatpush.bf16.msra.mxu0 %v805
    %1123 = vmatpush.bf16.msra.mxu0 %v801
    %1124 = vmatpush.bf16.msra.mxu0 %v797
    %1125 = vmatmul.bf16.gmra.mxu0 %v207
    %v1126 = vpop.f32.mrf.mxu0
    %v1127 = vadd.f32 %v1114, %v1126
    %v1128 = vpop.f32.mrf.mxu0
    %1129 = vdwg.mxu0
    %1130 = vmatpush.bf16.msra.mxu0 %v857
    %1131 = vmatpush.bf16.msra.mxu0 %v853
    %1132 = vmatpush.bf16.msra.mxu0 %v849
    %1133 = vmatpush.bf16.msra.mxu0 %v845
    %1134 = vmatpush.bf16.msra.mxu0 %v841
    %1135 = vmatpush.bf16.msra.mxu0 %v837
    %1136 = vmatpush.bf16.msra.mxu0 %v833
    %1137 = vmatpush.bf16.msra.mxu0 %v829
    %1138 = vmatmul.bf16.gmra.mxu0 %v208
    %v1139 = vpop.f32.mrf.mxu0
    %v1140 = vadd.f32 %v1127, %v1139
    %v1141 = vpop.f32.mrf.mxu0
    %1142 = vdwg.mxu0
    %1143 = vmatpush.bf16.msra.mxu0 %v762
    %1144 = vmatpush.bf16.msra.mxu0 %v758
    %1145 = vmatpush.bf16.msra.mxu0 %v754
    %1146 = vmatpush.bf16.msra.mxu0 %v750
    %1147 = vmatpush.bf16.msra.mxu0 %v746
    %1148 = vmatpush.bf16.msra.mxu0 %v742
    %1149 = vmatpush.bf16.msra.mxu0 %v738
    %1150 = vmatpush.bf16.msra.mxu0 %v734
    %1151 = vmatmul.bf16.gmra.mxu0 %v205
    %v1152 = vpop.f32.mrf.mxu0
    %v1153 = vadd.f32 %v342, %v1152
    %v1154 = vpop.f32.mrf.mxu0
    %1155 = vdwg.mxu0
    %1156 = vmatpush.bf16.msra.mxu0 %v794
    %1157 = vmatpush.bf16.msra.mxu0 %v790
    %1158 = vmatpush.bf16.msra.mxu0 %v786
    %1159 = vmatpush.bf16.msra.mxu0 %v782
    %1160 = vmatpush.bf16.msra.mxu0 %v778
    %1161 = vmatpush.bf16.msra.mxu0 %v774
    %1162 = vmatpush.bf16.msra.mxu0 %v770
    %1163 = vmatpush.bf16.msra.mxu0 %v766
    %1164 = vmatmul.bf16.gmra.mxu0 %v206
    %v1165 = vpop.f32.mrf.mxu0
    %v1166 = vadd.f32 %v1153, %v1165
    %v1167 = vpop.f32.mrf.mxu0
    %1168 = vdwg.mxu0
    %1169 = vmatpush.bf16.msra.mxu0 %v826
    %1170 = vmatpush.bf16.msra.mxu0 %v822
    %1171 = vmatpush.bf16.msra.mxu0 %v818
    %1172 = vmatpush.bf16.msra.mxu0 %v814
    %1173 = vmatpush.bf16.msra.mxu0 %v810
    %1174 = vmatpush.bf16.msra.mxu0 %v806
    %1175 = vmatpush.bf16.msra.mxu0 %v802
    %1176 = vmatpush.bf16.msra.mxu0 %v798
    %1177 = vmatmul.bf16.gmra.mxu0 %v207
    %v1178 = vpop.f32.mrf.mxu0
    %v1179 = vadd.f32 %v1166, %v1178
    %v1180 = vpop.f32.mrf.mxu0
    %1181 = vdwg.mxu0
    %1182 = vmatpush.bf16.msra.mxu0 %v858
    %1183 = vmatpush.bf16.msra.mxu0 %v854
    %1184 = vmatpush.bf16.msra.mxu0 %v850
    %1185 = vmatpush.bf16.msra.mxu0 %v846
    %1186 = vmatpush.bf16.msra.mxu0 %v842
    %1187 = vmatpush.bf16.msra.mxu0 %v838
    %1188 = vmatpush.bf16.msra.mxu0 %v834
    %1189 = vmatpush.bf16.msra.mxu0 %v830
    %1190 = vmatmul.bf16.gmra.mxu0 %v208
    %v1191 = vpop.f32.mrf.mxu0
    %v1192 = vadd.f32 %v1179, %v1191
    %v1193 = vpop.f32.mrf.mxu0
    %1194 = vdwg.mxu0
    %v1195 = vmax.f32 %v1036, 0.0
    %v1196 = vmax.f32 %v1088, 0.0
    %v1197 = vmax.f32 %v1140, 0.0
    %v1198 = vmax.f32 %v1192, 0.0
    %v1199 = vld [vmem:[#allocation10] sm:$0xf]
    %v1201 = vperm.slane %v1199, 0
    %v1202 = vperm.slane %v1199, 1
    %v1203 = vperm.slane %v1199, 2
    %v1204 = vperm.slane %v1199, 3
    %v1209 = vmul.f32 %v1195, %v1201
    %v1210 = vmul.f32 %v1196, %v1202
    %v1211 = vmul.f32 %v1197, %v1203
    %v1212 = vmul.f32 %v1198, %v1204
    %v1213 = vadd.f32 %v1209, %v1210
    %v1214 = vadd.f32 %v1213, %v1211
    %v1215 = vadd.f32 %v1214, %v1212
    %1216 = vadd.xlane.f32.xlu0 %v1215
    %v1217 = vpop.xlane.xlu0 %1216
    %s1218 = sld [smem:[#allocation2]]
    %v1219 = vstv %s1218
    %v1220 = vadd.f32 %v1217, %v1219
    %v1221 = vxor.u32 %v1220, 2147483648
    %v1222 = vmul.f32 %v1221, 1.442695
    %v1223 = vpow.pop %v1222
    %v1224 = vadd.f32 %v1223, 1.0
    %v1225 = vrcp.pop %v1224
    %v1226 = vmul.f32 %v1224, %v1225
    %v1227 = vsub.f32 1.0, %v1226
    %v1228 = vmul.f32 %v1225, %v1227
    %v1229 = vadd.f32 %v1225, %v1228
    %vm1230 = vweird.f32 %v1224
    %vm1231 = vweird.f32 %v1225
    %vm1232 = vmor %vm1230, %vm1231
    %v1233 = vsel %vm1232, %v1225, %v1229
    %v1234 = vand.u32 2147483647, %v1224
    %vm1235 = vcmp.eq.f32.partialorder %v1234, 8.507059e+37
    %v1236 = vand.u32 %v1224, 2147483648
    %v1237 = vor.u32 1.1754944e-38, %v1236
    %v1238 = vsel %vm1235, %v1237, %v1233
    %v1239 = vmul.f32 1.0, %v1238
    %vm1240 = vcmask 7168
    %1241 = vst.msk [vmem:[%s7] sm:$0xff] %vm1240, %v1239
    // Predicated region
    $region50: #{tpu_custom_call.1} parent=1 // pred_check
      _
    $region51: #{tpu_custom_call.1} parent=1 // pred_check_branch
      %1243 = sbr.rel (0) target = $region53
    $region52: #{tpu_custom_call.1} parent=1 // pred_region
      _
    $region53: #{tpu_custom_call.1} parent=1 // pred_fallthru
      _
    // Predicated region
    $region54: #{tpu_custom_call.1} parent=1 // pred_check
      _
    $region55: #{tpu_custom_call.1} parent=1 // pred_check_branch
      %1245 = sbr.rel (0) target = $region57
    $region56: #{tpu_custom_call.1} parent=1 // pred_region
      _
    $region57: #{tpu_custom_call.1} parent=1 // pred_fallthru
      _
    %1246 = vsyncpa [#allocation4], 1
    %1247 = vsyncpa [#allocation6], 1
    %1248 = vsyncpa [#allocation9], 1

</llo_original>
